<compile_context>
chip_gen: v6e
topology: v6e:2x2x1
jax: 0.10.0
libtpu: 0.0.40
codegen_flags: <defaults>
</compile_context>

<pallas_src>
import jax
import jax.numpy as jnp
from jax.experimental import pallas as pl
from jax.experimental.pallas import tpu as pltpu


def mlp_kernel(params_ref, x_ref, o_ref):
    # params_ref: SMEM (9,) f32 =
    #   [w1_00, w1_01, w1_10, w1_11, b1_0, b1_1, w2_0, w2_1, b2]
    #   w1 is stored (in, out): w1_ij = weight from input feature i to hidden unit j.
    # x_ref: VMEM (2, TR, 128)  feature-major, sublane/lane-dense batch tile
    # o_ref: VMEM (TR, 128)
    w1_00 = params_ref[0]
    w1_01 = params_ref[1]
    w1_10 = params_ref[2]
    w1_11 = params_ref[3]
    b1_0 = params_ref[4]
    b1_1 = params_ref[5]
    w2_0 = params_ref[6]
    w2_1 = params_ref[7]
    b2_0 = params_ref[8]

    # (TR, 128) per feature; widen to f32 so bf16 inputs work on every generation.
    x0 = x_ref[0].astype(jnp.float32)
    x1 = x_ref[1].astype(jnp.float32)

    # fc1 + ReLU as pure VPU FMAs (K=2 MXU matmul would waste >98% of the array).
    h0 = jnp.maximum(x0 * w1_00 + x1 * w1_10 + b1_0, 0.0)
    h1 = jnp.maximum(x0 * w1_01 + x1 * w1_11 + b1_1, 0.0)

    # fc2
    y = h0 * w2_0 + h1 * w2_1 + b2_0
    o_ref[...] = y.astype(o_ref.dtype)


def pack_params(w1, b1, w2, b2):
    """Pack the 9 scalars into one (9,) f32 array (SMEM-resident in the kernel).

    w1 must be (in, out)=(2, 2).  If importing from PyTorch, pass fc1.weight.T,
    fc1.bias, fc2.weight.reshape(-1), fc2.bias.
    """
    w1 = jnp.asarray(w1, jnp.float32)
    b1 = jnp.asarray(b1, jnp.float32)
    w2 = jnp.asarray(w2, jnp.float32)
    b2 = jnp.asarray(b2, jnp.float32)
    assert w1.shape == (2, 2) and b1.shape == (2,) and w2.shape == (2,) and b2.shape == (1,)
    return jnp.concatenate([w1.reshape(-1), b1, w2, b2])


def net_forward_packed(xt, params):
    """Run the kernel on an already feature-major, sublane-dense slab.

    xt:     (2, rows, 128) with rows a multiple of 8 (f32 or bf16)
    params: (9,) f32 from pack_params
    returns (rows, 128) f32
    """
    _, rows, lanes = xt.shape
    assert lanes == 128 and rows % 8 == 0

    # Rows per grid step: big enough to amortize per-step overhead (~8192 batch
    # elements = 64 rows), but keep >= 2 grid steps when possible so v7x's two
    # TensorCores both get work.  Multiple of 8 sublanes always.
    tr = 64
    if rows >= 16:
        tr = min(tr, pl.cdiv(rows // 2, 8) * 8)
    tr = min(tr, rows)
    # Pad rows up to a multiple of tr so the grid divides evenly.
    grid_b = pl.cdiv(rows, tr)
    rows_pad = grid_b * tr
    if rows_pad != rows:
        xt = jnp.pad(xt, ((0, 0), (0, rows_pad - rows), (0, 0)))

    out = pl.pallas_call(
        mlp_kernel,
        out_shape=jax.ShapeDtypeStruct((rows_pad, 128), jnp.float32),
        grid=(grid_b,),
        in_specs=[
            pl.BlockSpec(memory_space=pltpu.SMEM),             # 9 scalars, no VMEM tile
            pl.BlockSpec((2, tr, 128), lambda i: (0, i, 0)),   # dense input tile
        ],
        out_specs=pl.BlockSpec((tr, 128), lambda i: (i, 0)),   # dense output tile
        compiler_params=pltpu.CompilerParams(
            dimension_semantics=("parallel",),                 # shard batch across TCs (v7x)
        ),
    )(params, xt)
    return out[:rows]


def net_forward(x, w1, b1, w2, b2):
    """y = relu(x @ w1 + b1) @ w2 + b2, matching PyTorch Net.forward.

    x:  (B, 2) float32 or bfloat16 (PyTorch row-major layout)
    w1: (2, 2) stored (in, out); b1: (2,)
    w2: (2,)  (nn.Linear(2, 1) weight, flattened); b2: (1,)
    returns (B, 1) float32
    """
    B = x.shape[0]
    in_dtype = x.dtype if x.dtype in (jnp.dtype(jnp.bfloat16), jnp.dtype(jnp.float32)) else jnp.float32

    rows = pl.cdiv(max(B, 1), 128)
    rows = pl.cdiv(rows, 8) * 8            # multiple of 8 sublanes
    B_pad = rows * 128

    # Single-pass relayout: transpose to feature-major, one pad, reshape to the
    # sublane-dense (2, rows, 128) slab.  (Callers that already hold this layout
    # should use net_forward_packed and skip this HBM pass entirely.)
    xt = jnp.pad(x.astype(in_dtype).T, ((0, 0), (0, B_pad - B))).reshape(2, rows, 128)

    params = pack_params(w1, b1, w2, b2)
    out = net_forward_packed(xt, params)   # (rows, 128)

    # Padded lanes hold relu(b1)·w2 + b2 garbage; slicing to B keeps the result correct.
    return out.reshape(B_pad)[:B].reshape(B, 1)


def init_params(key):
    # Mirrors nn.Linear(2, 2) and nn.Linear(2, 1): uniform(-1/sqrt(fan_in), 1/sqrt(fan_in)).
    # Stored as (in, out) / flat vectors for the kernel's FMA form.
    k1, k2, k3, k4 = jax.random.split(key, 4)
    bound = 1.0 / jnp.sqrt(2.0)  # fan_in = 2 for both layers
    w1 = jax.random.uniform(k1, (2, 2), jnp.float32, -bound, bound)
    b1 = jax.random.uniform(k2, (2,), jnp.float32, -bound, bound)
    w2 = jax.random.uniform(k3, (2,), jnp.float32, -bound, bound)
    b2 = jax.random.uniform(k4, (1,), jnp.float32, -bound, bound)
    return w1, b1, w2, b2


if __name__ == "__main__":
    key = jax.random.PRNGKey(0)
    k_params, k_x1, k_x2 = jax.random.split(key, 3)
    w1, b1, w2, b2 = init_params(k_params)

    # Batch of 2-feature inputs (fc1 = nn.Linear(2, 2)); 2048 -> 16 sublane-rows ->
    # a 2-step grid (exercises multi-tile + the v7x two-TensorCore split).
    B = 2048
    x = jax.random.normal(k_x1, (B, 2), jnp.float32)
    out = jax.block_until_ready(net_forward(x, w1, b1, w2, b2))
    ref = jnp.maximum(x @ w1 + b1, 0.0) @ w2.reshape(2, 1) + b2
    assert out.shape == (B, 1)
    assert jnp.allclose(out, ref, atol=1e-5, rtol=1e-5)

    # Ragged tiny batch exercises the padding path (single 8x128-row tile).
    x_small = jax.random.normal(k_x2, (7, 2), jnp.float32)
    out_small = jax.block_until_ready(net_forward(x_small, w1, b1, w2, b2))
    ref_small = jnp.maximum(x_small @ w1 + b1, 0.0) @ w2.reshape(2, 1) + b2
    assert out_small.shape == (7, 1)
    assert jnp.allclose(out_small, ref_small, atol=1e-5, rtol=1e-5)

    print("KERNEL_OK")
</pallas_src>

<mosaic_0001>
module attributes {stable_mosaic.version = 11 : i64} {
  func.func @mlp_kernel(%arg0: i32, %arg1: memref<9xf32, #tpu.memory_space<smem>>, %arg2: memref<2x8x128xf32, #tpu.memory_space<vmem>>, %arg3: memref<8x128xf32, #tpu.memory_space<vmem>>) attributes {dimension_semantics = [#tpu.dimension_semantics<parallel>], iteration_bounds = array<i64: 2>, scalar_prefetch = 0 : i64, scratch_operands = 0 : i64, tpu.core_type = #tpu.core_type<tc>, window_params = [{transform_indices = @transform_0, window_bounds = array<i64: 9>}, {transform_indices = @transform_1, window_bounds = array<i64: 2, 8, 128>}, {transform_indices = @transform_2, window_bounds = array<i64: 8, 128>}]} {
    %c0 = arith.constant 0 : index
    %0 = memref.load %arg1[%c0] : memref<9xf32, #tpu.memory_space<smem>>
    %c1 = arith.constant 1 : index
    %1 = memref.load %arg1[%c1] : memref<9xf32, #tpu.memory_space<smem>>
    %c2 = arith.constant 2 : index
    %2 = memref.load %arg1[%c2] : memref<9xf32, #tpu.memory_space<smem>>
    %c3 = arith.constant 3 : index
    %3 = memref.load %arg1[%c3] : memref<9xf32, #tpu.memory_space<smem>>
    %c4 = arith.constant 4 : index
    %4 = memref.load %arg1[%c4] : memref<9xf32, #tpu.memory_space<smem>>
    %c5 = arith.constant 5 : index
    %5 = memref.load %arg1[%c5] : memref<9xf32, #tpu.memory_space<smem>>
    %c6 = arith.constant 6 : index
    %6 = memref.load %arg1[%c6] : memref<9xf32, #tpu.memory_space<smem>>
    %c7 = arith.constant 7 : index
    %7 = memref.load %arg1[%c7] : memref<9xf32, #tpu.memory_space<smem>>
    %c8 = arith.constant 8 : index
    %8 = memref.load %arg1[%c8] : memref<9xf32, #tpu.memory_space<smem>>
    %c0_0 = arith.constant 0 : index
    %c0_1 = arith.constant 0 : index
    %c0_2 = arith.constant 0 : index
    %9 = vector.load %arg2[%c0_0, %c0_1, %c0_2] : memref<2x8x128xf32, #tpu.memory_space<vmem>>, vector<1x8x128xf32>
    %10 = vector.shape_cast %9 : vector<1x8x128xf32> to vector<8x128xf32>
    %c1_3 = arith.constant 1 : index
    %c0_4 = arith.constant 0 : index
    %c0_5 = arith.constant 0 : index
    %11 = vector.load %arg2[%c1_3, %c0_4, %c0_5] : memref<2x8x128xf32, #tpu.memory_space<vmem>>, vector<1x8x128xf32>
    %12 = vector.shape_cast %11 : vector<1x8x128xf32> to vector<8x128xf32>
    %13 = vector.broadcast %0 : f32 to vector<8x128xf32>
    %14 = arith.mulf %10, %13 : vector<8x128xf32>
    %15 = vector.broadcast %2 : f32 to vector<8x128xf32>
    %16 = arith.mulf %12, %15 : vector<8x128xf32>
    %17 = arith.addf %14, %16 : vector<8x128xf32>
    %18 = vector.broadcast %4 : f32 to vector<8x128xf32>
    %19 = arith.addf %17, %18 : vector<8x128xf32>
    %cst = arith.constant 0.000000e+00 : f32
    %20 = vector.broadcast %cst : f32 to vector<8x128xf32>
    %21 = arith.maximumf %19, %20 : vector<8x128xf32>
    %22 = vector.broadcast %1 : f32 to vector<8x128xf32>
    %23 = arith.mulf %10, %22 : vector<8x128xf32>
    %24 = vector.broadcast %3 : f32 to vector<8x128xf32>
    %25 = arith.mulf %12, %24 : vector<8x128xf32>
    %26 = arith.addf %23, %25 : vector<8x128xf32>
    %27 = vector.broadcast %5 : f32 to vector<8x128xf32>
    %28 = arith.addf %26, %27 : vector<8x128xf32>
    %cst_6 = arith.constant 0.000000e+00 : f32
    %29 = vector.broadcast %cst_6 : f32 to vector<8x128xf32>
    %30 = arith.maximumf %28, %29 : vector<8x128xf32>
    %31 = vector.broadcast %6 : f32 to vector<8x128xf32>
    %32 = arith.mulf %21, %31 : vector<8x128xf32>
    %33 = vector.broadcast %7 : f32 to vector<8x128xf32>
    %34 = arith.mulf %30, %33 : vector<8x128xf32>
    %35 = arith.addf %32, %34 : vector<8x128xf32>
    %36 = vector.broadcast %8 : f32 to vector<8x128xf32>
    %37 = arith.addf %35, %36 : vector<8x128xf32>
    %c0_7 = arith.constant 0 : index
    %c0_8 = arith.constant 0 : index
    %38 = vector.load %arg3[%c0_7, %c0_8] : memref<8x128xf32, #tpu.memory_space<vmem>>, vector<8x128xf32>
    tpu.vector_store %arg3[%c0_7, %c0_8], %37 {strides = array<i32>} : memref<8x128xf32, #tpu.memory_space<vmem>>, vector<8x128xf32>,
    return
  }
  func.func @transform_0(%arg0: i32) -> i32 {
    %c0_i32 = arith.constant 0 : i32
    %c0_i32_0 = arith.constant 0 : i32
    return %c0_i32 : i32
  }
  func.func @transform_1(%arg0: i32) -> (i32, i32, i32) {
    %c0_i32 = arith.constant 0 : i32
    %c0_i32_0 = arith.constant 0 : i32
    %c0_i32_1 = arith.constant 0 : i32
    return %c0_i32, %arg0, %c0_i32_0 : i32, i32, i32
  }
  func.func @transform_2(%arg0: i32) -> (i32, i32) {
    %c0_i32 = arith.constant 0 : i32
    %c0_i32_0 = arith.constant 0 : i32
    return %arg0, %c0_i32 : i32, i32
  }
}

</mosaic_0001>

<llo_original>
// kernel: tpu_custom_call.1
$region0: #{tpu_custom_call.1}
  #allocation0 [shape = 'u32[]', space=smem, size = 0x4, offset = 0x4, fixed_abs, tag = 'smem constant byte address 0x4 - core index']
  #allocation1 [shape = 'u32[144,128]{1,0:T(1,128)}', space=vmem, size = 0x12000, scoped, tag = 'internal scratch']
  %s0 = inlined_call_operand.hbm [shape: f32[9], index: 0, kind: input, shape index: {}]
  %s1 = inlined_call_operand.hbm [shape: f32[2,16,128], index: 1, kind: input, shape index: {}]
  %s2 = inlined_call_operand.hbm [shape: f32[16,128], index: 2, kind: output, shape index: {}]
  %s3 = sld [smem:[#allocation0]]
  $region49: #{tpu_custom_call.1} parent=0
    _
  %s5 = ssub.s32 1, %s3
  %s6 = scalar_select 0, %s5, %s3
  $region1: #{tpu_custom_call.1} parent=0
    #allocation2 [shape = 'u8[512]{0}', space=smem, size = 0x200, scoped, tag = 'input window, operand 0, single buffered']
    #allocation3 [shape = 's32[2]{0}', space=sflag, size = 0x8, scoped, tag = 'scoped memory for tpu_custom_call.1']
    #allocation4 [shape = 's32[2]{0}', space=sflag, size = 0x8, scoped, tag = 'scoped memory for tpu_custom_call.1']
    #allocation5 [shape = 's32[2]{0}', space=sflag, size = 0x8, scoped, tag = 'scoped memory for tpu_custom_call.1']
    #allocation6 [shape = 'u8[16384]{0}', space=vmem, size = 0x4000, scoped, tag = 'input window, operand 1']
    #allocation7 [shape = 'u8[8192]{0}', space=vmem, size = 0x2000, scoped, tag = 'output window, operand 0']
    %7 = vsyncpa [#allocation5], 0
    %8 = vsyncpa [#allocation3], 0
    %s9 = scalar_lea.sflag [#allocation3], 1
    %10 = vsyncpa %s9, 0
    %11 = vsyncpa [#allocation4], 0
    %s12 = scalar_lea.sflag [#allocation4], 1
    %13 = vsyncpa %s12, 0
    loop: start=0, step=1, limit=4
    $region2: #{tpu_custom_call.1} parent=1 // loop_pre_header
      _
    $region3: #{tpu_custom_call.1} parent=1 // loop_header
      %s15 = sphi 0, %s19
      %p16 = scmp.ge.s32.totalorder %s15, 4
      %s23 = sphi 0, %s23
      %s25 = sphi 0, %s23
      %s26 = sphi 0, %s25
      %s40 = sphi 0, %s26
      %s46 = sphi 0, %s48
      %s49 = sphi 0, %s46
      %s50 = sphi 0, %s49
      %s66 = sphi 0, %s50
      %s72 = sphi 0, %s74
      %s75 = sphi 0, %s72
      %s76 = sphi 0, %s75
      %s92 = sphi 0, %s76
    $region4: #{tpu_custom_call.1} parent=1 // loop_header_branch
      %18 = sbr.rel (%p16) target = $region8
    $region5: #{tpu_custom_call.1} parent=1 // loop_body
      %s20 = ssub.s32 %s15, 1
      %s21 = ssub.s32 %s15, 2
      %s22 = sadd.s32 %s15, 1
      %s24 = sadd.s32 %s23, 1
      %p27 = scmp.eq.s32.totalorder %s15, 1
      %p28 = scmp.ne.s32.totalorder %s23, %s25
      %p29 = scmp.eq.s32.totalorder %s15, 0
      %p30 = por %p28, %p29
      %p31 = scmp.ne.s32.totalorder %s23, %s25
      %p32 = scmp.eq.s32.totalorder %s20, 1
      %p33 = por %p31, %p32
      %p34 = scmp.ne.s32.totalorder %s25, %s26
      %p35 = scmp.eq.s32.totalorder %s20, 0
      %p36 = por %p34, %p35
      %p37 = scmp.ne.s32.totalorder %s25, %s26
      %p38 = scmp.eq.s32.totalorder %s21, 1
      %p39 = por %p37, %p38
      %p41 = scmp.ne.s32.totalorder %s26, %s40
      %p42 = scmp.eq.s32.totalorder %s21, 0
      %p43 = por %p41, %p42
      %s44 = ssub.s32 %s15, %s22
      %p45 = scmp.eq.s32.totalorder %s44, 0
      %s47 = sadd.s32 %s46, 1
      %s48 = scalar_select %p45, %s46, %s47
      %p51 = pneg %p45
      %p52 = scmp.eq.s32.totalorder %s15, 1
      %p53 = por %p51, %p52
      %p54 = scmp.ne.s32.totalorder %s46, %s49
      %p55 = scmp.eq.s32.totalorder %s15, 0
      %p56 = por %p54, %p55
      %p57 = scmp.ne.s32.totalorder %s46, %s49
      %p58 = scmp.eq.s32.totalorder %s20, 1
      %p59 = por %p57, %p58
      %p60 = scmp.ne.s32.totalorder %s49, %s50
      %p61 = scmp.eq.s32.totalorder %s20, 0
      %p62 = por %p60, %p61
      %p63 = scmp.ne.s32.totalorder %s49, %s50
      %p64 = scmp.eq.s32.totalorder %s21, 1
      %p65 = por %p63, %p64
      %p67 = scmp.ne.s32.totalorder %s50, %s66
      %p68 = scmp.eq.s32.totalorder %s21, 0
      %p69 = por %p67, %p68
      %s70 = ssub.s32 %s15, %s22
      %p71 = scmp.eq.s32.totalorder %s70, 0
      %s73 = sadd.s32 %s72, 1
      %s74 = scalar_select %p71, %s72, %s73
      %p77 = pneg %p71
      %p78 = scmp.eq.s32.totalorder %s15, 1
      %p79 = por %p77, %p78
      %p80 = scmp.ne.s32.totalorder %s72, %s75
      %p81 = scmp.eq.s32.totalorder %s15, 0
      %p82 = por %p80, %p81
      %p83 = scmp.ne.s32.totalorder %s72, %s75
      %p84 = scmp.eq.s32.totalorder %s20, 1
      %p85 = por %p83, %p84
      %p86 = scmp.ne.s32.totalorder %s75, %s76
      %p87 = scmp.eq.s32.totalorder %s20, 0
      %p88 = por %p86, %p87
      %p89 = scmp.ne.s32.totalorder %s75, %s76
      %p90 = scmp.eq.s32.totalorder %s21, 1
      %p91 = por %p89, %p90
      %p93 = scmp.ne.s32.totalorder %s76, %s92
      %p94 = scmp.eq.s32.totalorder %s21, 0
      %p95 = por %p93, %p94
      %p96 = scmp.le.s32.totalorder 1, %s15
      %p97 = scmp.lt.s32.totalorder %s15, 3
      %p98 = pnand %p96, %p97
      %p99 = pneg %p98
      // Predicated region
      $region9: #{tpu_custom_call.1} parent=5 // pred_check
        _
      $region10: #{tpu_custom_call.1} parent=5 // pred_check_branch
        %101 = sbr.rel (%p98) target = $region12
      $region11: #{tpu_custom_call.1} parent=5 // pred_region
        %s102 = ssub.s32 %s15, 1
        // Predicated region
        $region13: #{tpu_custom_call.1} parent=11 // pred_check
          %p103 = pneg %p36
        $region14: #{tpu_custom_call.1} parent=11 // pred_check_branch
          %105 = sbr.rel (%p103) target = $region16
        $region15: #{tpu_custom_call.1} parent=11 // pred_region
          %s107 = ssub.s32 16, 16
          %108 = vsyncadd [#allocation5], %s107
          %111 = dma.hbm_to_smem %s0, 16, [#allocation2], [#allocation5]
        $region16: #{tpu_custom_call.1} parent=11 // pred_fallthru
          _
      $region12: #{tpu_custom_call.1} parent=5 // pred_fallthru
        _
      %p112 = scmp.lt.s32.totalorder %s15, 2
      // Predicated region
      $region17: #{tpu_custom_call.1} parent=5 // pred_check
        %p113 = pneg %p112
      $region18: #{tpu_custom_call.1} parent=5 // pred_check_branch
        %115 = sbr.rel (%p113) target = $region20
      $region19: #{tpu_custom_call.1} parent=5 // pred_region
        // Predicated region
        $region21: #{tpu_custom_call.1} parent=19 // pred_check
          %p116 = pneg %p56
        $region22: #{tpu_custom_call.1} parent=19 // pred_check_branch
          %118 = sbr.rel (%p116) target = $region24
        $region23: #{tpu_custom_call.1} parent=19 // pred_region
          %s119 = sand.u32 %s46, 1
          %s120 = scalar_lea.sflag [#allocation3], %s119
          %s121 = sand.u32 %s46, 1
          %s122 = smul.addr %s121, 16
          %s123 = scalar_lea.vmem [#allocation6], %s122
          %s125 = ssub.s32 256, 256
          %126 = vsyncadd %s120, %s125
          %s127 = smul.addr %s15, 128
          %s128 = scalar_lea.hbm %s1, %s127
          %s129 = sshll.u32 %s123, 4
          %s130 = int_to_ptr.vmem [resolvable:$true] %s129
          %135 = dma.hbm_to_vmem [thread:$0]  %s128, 256, %s130, %s120, 256, 128, 8
        $region24: #{tpu_custom_call.1} parent=19 // pred_fallthru
          _
      $region20: #{tpu_custom_call.1} parent=5 // pred_fallthru
        _
      %p136 = scmp.le.s32.totalorder 1, %s15
      %p137 = scmp.lt.s32.totalorder %s15, 3
      %p138 = pnand %p136, %p137
      %p139 = pneg %p138
      // Predicated region
      $region25: #{tpu_custom_call.1} parent=5 // pred_check
        _
      $region26: #{tpu_custom_call.1} parent=5 // pred_check_branch
        %141 = sbr.rel (%p138) target = $region28
      $region27: #{tpu_custom_call.1} parent=5 // pred_region
        %s142 = ssub.s32 %s15, 1
        // Predicated region
        $region29: #{tpu_custom_call.1} parent=27 // pred_check
          %p143 = pneg %p36
        $region30: #{tpu_custom_call.1} parent=27 // pred_check_branch
          %145 = sbr.rel (%p143) target = $region32
        $region31: #{tpu_custom_call.1} parent=27 // pred_region
          %146 = dma.done [#allocation5], 16
        $region32: #{tpu_custom_call.1} parent=27 // pred_fallthru
          _
        %s147 = sand.u32 %s49, 1
        %s148 = scalar_lea.sflag [#allocation3], %s147
        %s149 = sand.u32 %s49, 1
        %s150 = smul.addr %s149, 16
        %s151 = scalar_lea.vmem [#allocation6], %s150
        // Predicated region
        $region33: #{tpu_custom_call.1} parent=27 // pred_check
          %p152 = pneg %p62
        $region34: #{tpu_custom_call.1} parent=27 // pred_check_branch
          %154 = sbr.rel (%p152) target = $region36
        $region35: #{tpu_custom_call.1} parent=27 // pred_region
          %155 = dma.done %s148, 256
        $region36: #{tpu_custom_call.1} parent=27 // pred_fallthru
          _
        %156 = sfence
        %p157 = pneg %p36
        %p158 = pneg %p33
        %s159 = sand.u32 %s49, 1
        %s160 = scalar_lea.sflag [#allocation3], %s159
        %s161 = sand.u32 %s49, 1
        %s162 = smul.addr %s161, 16
        %s163 = scalar_lea.vmem [#allocation6], %s162
        %p164 = pneg %p62
        %p165 = pneg %p59
        %p166 = pneg %p88
        %p167 = pneg %p85
        %s168 = sand.u32 %s75, 1
        %s169 = scalar_lea.sflag [#allocation4], %s168
        %s170 = sand.u32 %s75, 1
        %s171 = smul.addr %s170, 8
        %s172 = scalar_lea.vmem [#allocation7], %s171
        %s173 = sld [smem:[#allocation2]]
        %s174 = sld [smem:[#allocation2 + $0x1]]
        %s175 = sld [smem:[#allocation2 + $0x2]]
        %s176 = sld [smem:[#allocation2 + $0x3]]
        %s177 = sld [smem:[#allocation2 + $0x4]]
        %s178 = sld [smem:[#allocation2 + $0x5]]
        %s179 = sld [smem:[#allocation2 + $0x6]]
        %s180 = sld [smem:[#allocation2 + $0x7]]
        %s181 = sld [smem:[#allocation2 + $0x8]]
        %v182 = vld [vmem:[%s151] sm:$0xff]
        %s183 = scalar_lea.vmem %s151, 8 [#allocation6]
        %v184 = vld [vmem:[%s183] sm:$0xff]
        %v185 = vstv %s173
        %v186 = vmul.f32 %v182, %v185
        %v187 = vstv %s175
        %v188 = vmul.f32 %v184, %v187
        %v189 = vadd.f32 %v186, %v188
        %v190 = vstv %s177
        %v191 = vadd.f32 %v189, %v190
        %v192 = vmax.f32 %v191, 0.0
        %v193 = vstv %s174
        %v194 = vmul.f32 %v182, %v193
        %v195 = vstv %s176
        %v196 = vmul.f32 %v184, %v195
        %v197 = vadd.f32 %v194, %v196
        %v198 = vstv %s178
        %v199 = vadd.f32 %v197, %v198
        %v200 = vmax.f32 %v199, 0.0
        %v201 = vstv %s179
        %v202 = vmul.f32 %v192, %v201
        %v203 = vstv %s180
        %v204 = vmul.f32 %v200, %v203
        %v205 = vadd.f32 %v202, %v204
        %v206 = vstv %s181
        %v207 = vadd.f32 %v205, %v206
        %208 = vst [vmem:[%s172] sm:$0xff] %v207
        %s209 = sand.u32 %s75, 1
        %s210 = scalar_lea.sflag [#allocation4], %s209
        %s211 = sand.u32 %s75, 1
        %s212 = smul.addr %s211, 8
        %s213 = scalar_lea.vmem [#allocation7], %s212
        // Predicated region
        $region37: #{tpu_custom_call.1} parent=27 // pred_check
          %p214 = pneg %p85
        $region38: #{tpu_custom_call.1} parent=27 // pred_check_branch
          %216 = sbr.rel (%p214) target = $region40
        $region39: #{tpu_custom_call.1} parent=27 // pred_region
          %s218 = ssub.s32 128, 128
          %219 = vsyncadd %s210, %s218
          %s220 = smul.addr %s20, 128
          %s221 = scalar_lea.hbm %s2, %s220
          %s223 = sshll.u32 %s213, 4
          %s224 = int_to_ptr.vmem [resolvable:$true] %s223
          %226 = dma.vmem_to_hbm [thread:$0]  %s224, 128, %s221, %s210
        $region40: #{tpu_custom_call.1} parent=27 // pred_fallthru
          _
      $region28: #{tpu_custom_call.1} parent=5 // pred_fallthru
        _
      %p227 = scmp.le.s32.totalorder 2, %s15
      // Predicated region
      $region41: #{tpu_custom_call.1} parent=5 // pred_check
        %p228 = pneg %p227
      $region42: #{tpu_custom_call.1} parent=5 // pred_check_branch
        %230 = sbr.rel (%p228) target = $region44
      $region43: #{tpu_custom_call.1} parent=5 // pred_region
        %s231 = ssub.s32 %s15, 2
        // Predicated region
        $region45: #{tpu_custom_call.1} parent=43 // pred_check
          %p232 = pneg %p91
        $region46: #{tpu_custom_call.1} parent=43 // pred_check_branch
          %234 = sbr.rel (%p232) target = $region48
        $region47: #{tpu_custom_call.1} parent=43 // pred_region
          %s235 = sand.u32 %s76, 1
          %s236 = scalar_lea.sflag [#allocation4], %s235
          %s237 = sand.u32 %s76, 1
          %s238 = smul.addr %s237, 8
          %s239 = scalar_lea.vmem [#allocation7], %s238
          %240 = dma.done %s236, 128
        $region48: #{tpu_custom_call.1} parent=43 // pred_fallthru
          _
      $region44: #{tpu_custom_call.1} parent=5 // pred_fallthru
        _
    $region6: #{tpu_custom_call.1} parent=1 // loop_footer
      %s19 = sadd.s32 1, %s15
    $region7: #{tpu_custom_call.1} parent=1 // loop_footer_branch
      %14 = sbr.rel target = $region3
    $region8: #{tpu_custom_call.1} parent=1 // loop_exit
      _
    %241 = vsyncpa [#allocation3], 1
    %s242 = scalar_lea.sflag [#allocation3], 1
    %243 = vsyncpa %s242, 1
    %244 = vsyncpa [#allocation4], 1
    %s245 = scalar_lea.sflag [#allocation4], 1
    %246 = vsyncpa %s245, 1
    %247 = vsyncpa [#allocation5], 1
    %s248 = scalar_lea.sflag [#allocation5], 1
    %249 = vsyncpa %s248, 1

</llo_original>
